<compile_context>
chip_gen: v5e
topology: v5e:2x2
jax: 0.10.0
libtpu: 0.0.40
codegen_flags: <defaults>
</compile_context>

<pallas_src>
import math
import functools

import jax
import jax.numpy as jnp
from jax.experimental import pallas as pl
from jax.experimental.pallas import tpu as pltpu


# --------------------------------------------------------------------------
# Kernel
# --------------------------------------------------------------------------
def _swiglu_mlp_kernel(x_ref, w1_ref, b1_ref, w2_ref, b2_ref, w3_ref, b3_ref,
                       o_ref, acc_ref):
    """One (row-tile i, hidden-tile j) grid step.

    Computes the (tm, th) slice of SiLU(x@W1+b1) * (x@W2+b2) and accumulates
    its down-projection contribution into a (tm, D) f32 accumulator.
    """
    j = pl.program_id(1)

    x = x_ref[...]                                                   # (tm, D)
    h1 = jnp.dot(x, w1_ref[...], preferred_element_type=jnp.float32) + b1_ref[...]
    h2 = jnp.dot(x, w2_ref[...], preferred_element_type=jnp.float32) + b2_ref[...]

    # SwiGLU gating in f32 (sigmoid lowers to the EUP slot; free next to MXU).
    gated = h2 * (h1 * jax.nn.sigmoid(h1))                           # (tm, th) f32

    contrib = jnp.dot(gated.astype(w3_ref.dtype), w3_ref[...],
                      preferred_element_type=jnp.float32)            # (tm, D) f32

    @pl.when(j == 0)
    def _first():
        # Direct write: saves a full (tm, D) zero-store + read-add pass.
        acc_ref[...] = contrib

    @pl.when(j > 0)
    def _accumulate():
        acc_ref[...] += contrib

    @pl.when(j == pl.num_programs(1) - 1)
    def _finalize():
        o_ref[...] = (acc_ref[...] + b3_ref[...]).astype(o_ref.dtype)


# --------------------------------------------------------------------------
# Tiling / VMEM helpers
# --------------------------------------------------------------------------
def _round_up(a, b):
    return ((a + b - 1) // b) * b


_VMEM_CAP_CACHE = None


def _vmem_capacity_bytes():
    """Physical VMEM capacity of the local TPU (conservative 64 MiB fallback)."""
    global _VMEM_CAP_CACHE
    if _VMEM_CAP_CACHE is None:
        cap = 64 * 1024 * 1024          # safe on every generation (v7x floor)
        try:
            info = pltpu.get_tpu_info()
            cap_attr = getattr(info, "vmem_capacity_bytes", None)
            if cap_attr:
                cap = int(cap_attr)
        except Exception:
            pass
        _VMEM_CAP_CACHE = cap
    return _VMEM_CAP_CACHE


def _vmem_bytes_estimate(tm, th, D, x_isz, w_isz, o_isz, wbuf):
    """VMEM footprint estimate, including Mosaic-materialized intermediates."""
    b = 0
    b += 2 * tm * D * x_isz              # x tile (double buffered)
    b += wbuf * 2 * D * th * w_isz       # W1, W2 tiles (wbuf-deep)
    b += wbuf * th * D * w_isz           # W3 tile
    b += 2 * (2 * th + D) * 4            # biases (f32, double buffered)
    b += 2 * tm * D * o_isz              # output tile
    b += tm * D * 4                      # f32 accumulator scratch
    b += 4 * tm * th * 4                 # h1 / h2 / gated / cast temporaries
    b += 2 * 1024 * 1024                 # compiler internal scratch slack
    return b


def _th_candidates(H_pad, cap):
    """Multiples of 128 that divide H_pad, descending, <= cap."""
    q = H_pad // 128
    out = []
    for d in range(q, 0, -1):
        if q % d == 0:
            th = 128 * d
            if th <= cap:
                out.append(th)
    return out or [128]


def _choose_tiles(M, H_pad, D, x_isz, w_isz, o_isz, vmem_cap):
    """Pick (tm, M_pad, th, weight_buffer_depth) that fit the VMEM budget."""
    budget = int(0.80 * vmem_cap)

    if M <= 256:
        # Decode / small-M: one padded row tile so every weight byte is read
        # from HBM exactly once; big hidden tiles + 3-deep weight buffering.
        tm = max(8, _round_up(M, 8))
        wbuf = 3
        for th in _th_candidates(H_pad, 2048):
            if _vmem_bytes_estimate(tm, th, D, x_isz, w_isz, o_isz, wbuf) <= budget:
                return tm, _round_up(M, tm), th, wbuf
        return tm, _round_up(M, tm), 128, wbuf

    # Prefill: maximise tm (arithmetic intensity ~ tm FLOP / weight byte),
    # then th, subject to the VMEM budget of this chip generation.
    wbuf = 2
    tm_cap = max(128, _round_up(M, 128))
    tm_cands = [t for t in (1024, 768, 512, 384, 256, 128) if t <= tm_cap] or [128]
    th_cands = _th_candidates(H_pad, 512)
    for tm in tm_cands:
        for th in th_cands:
            if _vmem_bytes_estimate(tm, th, D, x_isz, w_isz, o_isz, wbuf) <= budget:
                return tm, _round_up(M, tm), th, wbuf
    return 128, _round_up(M, 128), 128, wbuf


def _weight_spec(shape, index_map, nbuf):
    """BlockSpec for a streamed weight, optionally with >2-deep buffering."""
    if nbuf > 2:
        try:
            return pl.BlockSpec(shape, index_map, pipeline_mode=pl.Buffered(nbuf))
        except Exception:
            pass  # older jax: fall back to default double buffering
    return pl.BlockSpec(shape, index_map)


# --------------------------------------------------------------------------
# One-time weight preparation (outside the per-call hot path)
# --------------------------------------------------------------------------
def prepare_llama_mlp_params(w1, b1, w2, b2, w3, b3, *, compute_dtype=None):
    """Cast and H-pad the weights ONCE.  Call this at model-build time.

    w1, w2: (n_embd, H)    w3: (H, n_embd)    biases may be None.
    """
    D, H = w1.shape
    H_pad = _round_up(H, 128)
    wdt = jnp.dtype(compute_dtype) if compute_dtype is not None else jnp.dtype(w1.dtype)

    if b1 is None:
        b1 = jnp.zeros((H,), jnp.float32)
    if b2 is None:
        b2 = jnp.zeros((H,), jnp.float32)
    if b3 is None:
        b3 = jnp.zeros((D,), jnp.float32)

    w1 = w1.astype(wdt)
    w2 = w2.astype(wdt)
    w3 = w3.astype(wdt)
    b1 = b1.astype(jnp.float32)
    b2 = b2.astype(jnp.float32)
    b3 = b3.astype(jnp.float32)

    if H_pad != H:
        # Zero-padded hidden units contribute exactly 0 through W3.
        w1 = jnp.pad(w1, ((0, 0), (0, H_pad - H)))
        w2 = jnp.pad(w2, ((0, 0), (0, H_pad - H)))
        w3 = jnp.pad(w3, ((0, H_pad - H), (0, 0)))
        b1 = jnp.pad(b1, ((0, H_pad - H),))
        b2 = jnp.pad(b2, ((0, H_pad - H),))

    return {
        "w1": w1, "w2": w2, "w3": w3,
        "b1": b1.reshape(1, H_pad),
        "b2": b2.reshape(1, H_pad),
        "b3": b3.reshape(1, D),
    }


# --------------------------------------------------------------------------
# Forward pass
# --------------------------------------------------------------------------
@jax.jit
def llama_mlp(x, params):
    """LLaMA SwiGLU MLP.  x: (B, T, n_embd) -> (B, T, n_embd) in x.dtype."""
    w1, w2, w3 = params["w1"], params["w2"], params["w3"]
    b1, b2, b3 = params["b1"], params["b2"], params["b3"]

    B, T, D = x.shape
    H_pad = w1.shape[1]
    M = B * T
    orig_dtype = x.dtype
    wdt = w1.dtype

    x_isz = jnp.dtype(wdt).itemsize          # x is cast to the compute dtype
    w_isz = jnp.dtype(wdt).itemsize
    o_isz = jnp.dtype(orig_dtype).itemsize

    vmem_cap = _vmem_capacity_bytes()
    tm, M_pad, th, wbuf = _choose_tiles(M, H_pad, D, x_isz, w_isz, o_isz, vmem_cap)
    n_h = H_pad // th
    if n_h < 2:
        wbuf = 2                               # nothing to multi-buffer

    x2d = x.reshape(M, D).astype(wdt)
    if M_pad != M:                             # pad rows instead of asserting
        x2d = jnp.pad(x2d, ((0, M_pad - M), (0, 0)))

    est = _vmem_bytes_estimate(tm, th, D, x_isz, w_isz, o_isz, max(wbuf, 2))
    vmem_limit = int(min(0.85 * vmem_cap, max(32 * 1024 * 1024, est * 1.3)))

    grid = (M_pad // tm, n_h)

    out2d = pl.pallas_call(
        _swiglu_mlp_kernel,
        out_shape=jax.ShapeDtypeStruct((M_pad, D), orig_dtype),
        grid_spec=pltpu.PrefetchScalarGridSpec(
            num_scalar_prefetch=0,
            grid=grid,
            in_specs=[
                pl.BlockSpec((tm, D), lambda i, j: (i, 0)),        # x row tile
                _weight_spec((D, th), lambda i, j: (0, j), wbuf),  # W1 tile
                pl.BlockSpec((1, th), lambda i, j: (0, j)),        # b1
                _weight_spec((D, th), lambda i, j: (0, j), wbuf),  # W2 tile
                pl.BlockSpec((1, th), lambda i, j: (0, j)),        # b2
                _weight_spec((th, D), lambda i, j: (j, 0), wbuf),  # W3 tile
                pl.BlockSpec((1, D), lambda i, j: (0, 0)),         # b3
            ],
            out_specs=pl.BlockSpec((tm, D), lambda i, j: (i, 0)),
            scratch_shapes=[pltpu.VMEM((tm, D), jnp.float32)],
        ),
        compiler_params=pltpu.CompilerParams(
            dimension_semantics=("parallel", "arbitrary"),
            vmem_limit_bytes=vmem_limit,
        ),
    )(x2d, w1, b1, w2, b2, w3, b3)

    if M_pad != M:
        out2d = out2d[:M]
    return out2d.reshape(B, T, D)


# --------------------------------------------------------------------------
# Reference & test
# --------------------------------------------------------------------------
def _init_linear(key, fan_in, fan_out, dtype=jnp.float32):
    """nn.Linear default init: U(-1/sqrt(fan_in), 1/sqrt(fan_in)).
    Returns W of shape (fan_in, fan_out) (pre-transposed) and b of (fan_out,)."""
    k_w, k_b = jax.random.split(key)
    bound = 1.0 / math.sqrt(fan_in)
    w = jax.random.uniform(k_w, (fan_in, fan_out), dtype, minval=-bound, maxval=bound)
    b = jax.random.uniform(k_b, (fan_out,), dtype, minval=-bound, maxval=bound)
    return w, b


def _reference(x, w1, b1, w2, b2, w3, b3):
    h1 = x @ w1 + b1
    h2 = x @ w2 + b2
    return (jax.nn.silu(h1) * h2) @ w3 + b3


if __name__ == "__main__":
    keys = jax.random.split(jax.random.PRNGKey(0), 8)

    # --- Case 1: small decode-like shape (M <= 256 path, buffered weight DMAs)
    B, T, n_embd, mlp_hidden = 2, 8, 128, 256
    x = jax.random.normal(keys[0], (B, T, n_embd), dtype=jnp.float32)
    w1, b1 = _init_linear(keys[1], n_embd, mlp_hidden)
    w2, b2 = _init_linear(keys[2], n_embd, mlp_hidden)
    w3, b3 = _init_linear(keys[3], mlp_hidden, n_embd)
    ref = _reference(x, w1, b1, w2, b2, w3, b3)

    params_f32 = prepare_llama_mlp_params(w1, b1, w2, b2, w3, b3)
    out = jax.block_until_ready(llama_mlp(x, params_f32))
    assert out.shape == (B, T, n_embd) and out.dtype == x.dtype
    assert jnp.allclose(out, ref, atol=1e-4, rtol=1e-4), "f32 mismatch vs reference"

    # bf16 weights / f32 accumulation; output dtype still follows x.dtype.
    params_bf16 = prepare_llama_mlp_params(w1, b1, w2, b2, w3, b3,
                                           compute_dtype=jnp.bfloat16)
    out_bf16 = jax.block_until_ready(llama_mlp(x, params_bf16))
    assert out_bf16.shape == (B, T, n_embd) and out_bf16.dtype == x.dtype
    assert jnp.allclose(out_bf16, ref, atol=1e-1, rtol=1e-1), \
        "bf16 mismatch vs reference"

    # --- Case 2: prefill-like shape (M > 256 path, multi-step hidden reduction)
    B2, T2, D2, H2 = 2, 256, 128, 1024
    x2 = jax.random.normal(keys[4], (B2, T2, D2), dtype=jnp.float32)
    w1b, b1b = _init_linear(keys[5], D2, H2)
    w2b, b2b = _init_linear(keys[6], D2, H2)
    w3b, b3b = _init_linear(keys[7], H2, D2)
    ref2 = _reference(x2, w1b, b1b, w2b, b2b, w3b, b3b)

    params2 = prepare_llama_mlp_params(w1b, b1b, w2b, b2b, w3b, b3b)
    out2 = jax.block_until_ready(llama_mlp(x2, params2))
    assert out2.shape == (B2, T2, D2)
    assert jnp.allclose(out2, ref2, atol=5e-4, rtol=5e-4), \
        "prefill-path mismatch vs reference"

    print("KERNEL_OK")
</pallas_src>

<mosaic_0001>
module attributes {stable_mosaic.version = 11 : i64} {
  func.func @_swiglu_mlp_kernel(%arg0: i32, %arg1: i32, %arg2: memref<16x128xf32, #tpu.memory_space<vmem>>, %arg3: memref<128x256xf32, #tpu.memory_space<vmem>>, %arg4: memref<1x256xf32, #tpu.memory_space<vmem>>, %arg5: memref<128x256xf32, #tpu.memory_space<vmem>>, %arg6: memref<1x256xf32, #tpu.memory_space<vmem>>, %arg7: memref<256x128xf32, #tpu.memory_space<vmem>>, %arg8: memref<1x128xf32, #tpu.memory_space<vmem>>, %arg9: memref<16x128xf32, #tpu.memory_space<vmem>>, %arg10: memref<16x128xf32, #tpu.memory_space<vmem>>) attributes {dimension_semantics = [#tpu.dimension_semantics<parallel>, #tpu.dimension_semantics<arbitrary>], iteration_bounds = array<i64: 1, 1>, scalar_prefetch = 0 : i64, scratch_operands = 1 : i64, tpu.core_type = #tpu.core_type<tc>, window_params = [{transform_indices = @transform_0, window_bounds = array<i64: 16, 128>}, {transform_indices = @transform_1, window_bounds = array<i64: 128, 256>}, {transform_indices = @transform_2, window_bounds = array<i64: 1, 256>}, {transform_indices = @transform_3, window_bounds = array<i64: 128, 256>}, {transform_indices = @transform_4, window_bounds = array<i64: 1, 256>}, {transform_indices = @transform_5, window_bounds = array<i64: 256, 128>}, {pipeline_mode = #tpu.pipeline_mode<synchronous>, transform_indices = @transform_6, window_bounds = array<i64: 1, 128>}, {transform_indices = @transform_7, window_bounds = array<i64: 16, 128>}]} {
    %c0 = arith.constant 0 : index
    %c0_0 = arith.constant 0 : index
    %0 = vector.load %arg2[%c0, %c0_0] : memref<16x128xf32, #tpu.memory_space<vmem>>, vector<16x128xf32>
    %c0_1 = arith.constant 0 : index
    %c0_2 = arith.constant 0 : index
    %1 = vector.load %arg3[%c0_1, %c0_2] : memref<128x256xf32, #tpu.memory_space<vmem>>, vector<128x256xf32>
    %cst = arith.constant dense<0.000000e+00> : vector<16x256xf32>
    %2 = tpu.matmul %0, %1, %cst {dimension_numbers = #tpu.dot_dimension_numbers<[1], [0], [0], [1], [0, 0, 1, 1], [], []>} : vector<16x128xf32>, vector<128x256xf32>, vector<16x256xf32> -> vector<16x256xf32>
    %c0_3 = arith.constant 0 : index
    %c0_4 = arith.constant 0 : index
    %3 = vector.load %arg4[%c0_3, %c0_4] : memref<1x256xf32, #tpu.memory_space<vmem>>, vector<1x256xf32>
    %4 = vector.broadcast %3 : vector<1x256xf32> to vector<16x256xf32>
    %5 = arith.addf %2, %4 : vector<16x256xf32>
    %c0_5 = arith.constant 0 : index
    %c0_6 = arith.constant 0 : index
    %6 = vector.load %arg5[%c0_5, %c0_6] : memref<128x256xf32, #tpu.memory_space<vmem>>, vector<128x256xf32>
    %cst_7 = arith.constant dense<0.000000e+00> : vector<16x256xf32>
    %7 = tpu.matmul %0, %6, %cst_7 {dimension_numbers = #tpu.dot_dimension_numbers<[1], [0], [0], [1], [0, 0, 1, 1], [], []>} : vector<16x128xf32>, vector<128x256xf32>, vector<16x256xf32> -> vector<16x256xf32>
    %c0_8 = arith.constant 0 : index
    %c0_9 = arith.constant 0 : index
    %8 = vector.load %arg6[%c0_8, %c0_9] : memref<1x256xf32, #tpu.memory_space<vmem>>, vector<1x256xf32>
    %9 = vector.broadcast %8 : vector<1x256xf32> to vector<16x256xf32>
    %10 = arith.addf %7, %9 : vector<16x256xf32>
    %11 = arith.negf %5 : vector<16x256xf32>
    %12 = math.exp %11 : vector<16x256xf32>
    %cst_10 = arith.constant 1.000000e+00 : f32
    %13 = vector.broadcast %cst_10 : f32 to vector<16x256xf32>
    %14 = arith.addf %13, %12 : vector<16x256xf32>
    %15 = arith.divf %13, %14 : vector<16x256xf32>
    %16 = arith.mulf %5, %15 : vector<16x256xf32>
    %17 = arith.mulf %10, %16 : vector<16x256xf32>
    %c0_11 = arith.constant 0 : index
    %c0_12 = arith.constant 0 : index
    %18 = vector.load %arg7[%c0_11, %c0_12] : memref<256x128xf32, #tpu.memory_space<vmem>>, vector<256x128xf32>
    %cst_13 = arith.constant dense<0.000000e+00> : vector<16x128xf32>
    %19 = tpu.matmul %17, %18, %cst_13 {dimension_numbers = #tpu.dot_dimension_numbers<[1], [0], [0], [1], [0, 0, 1, 1], [], []>} : vector<16x256xf32>, vector<256x128xf32>, vector<16x128xf32> -> vector<16x128xf32>
    %c0_i32 = arith.constant 0 : i32
    %20 = arith.cmpi eq, %arg1, %c0_i32 : i32
    %21 = arith.extui %20 : i1 to i32
    %c0_i32_14 = arith.constant 0 : i32
    %22 = arith.cmpi ne, %21, %c0_i32_14 : i32
    scf.if %22 {
      %c0_19 = arith.constant 0 : index
      %c0_20 = arith.constant 0 : index
      %29 = vector.load %arg10[%c0_19, %c0_20] : memref<16x128xf32, #tpu.memory_space<vmem>>, vector<16x128xf32>
      tpu.vector_store %arg10[%c0_19, %c0_20], %19 {strides = array<i32>} : memref<16x128xf32, #tpu.memory_space<vmem>>, vector<16x128xf32>,
    } else {
    }
    %c0_i32_15 = arith.constant 0 : i32
    %23 = arith.cmpi sgt, %arg1, %c0_i32_15 : i32
    %24 = arith.extui %23 : i1 to i32
    %c0_i32_16 = arith.constant 0 : i32
    %25 = arith.cmpi ne, %24, %c0_i32_16 : i32
    scf.if %25 {
      %c0_19 = arith.constant 0 : index
      %c0_20 = arith.constant 0 : index
      %29 = vector.load %arg10[%c0_19, %c0_20] : memref<16x128xf32, #tpu.memory_space<vmem>>, vector<16x128xf32>
      %30 = arith.addf %29, %19 : vector<16x128xf32>
      %c0_21 = arith.constant 0 : index
      %c0_22 = arith.constant 0 : index
      %31 = vector.load %arg10[%c0_21, %c0_22] : memref<16x128xf32, #tpu.memory_space<vmem>>, vector<16x128xf32>
      tpu.vector_store %arg10[%c0_21, %c0_22], %30 {strides = array<i32>} : memref<16x128xf32, #tpu.memory_space<vmem>>, vector<16x128xf32>,
    } else {
    }
    %c0_i32_17 = arith.constant 0 : i32
    %26 = arith.cmpi eq, %arg1, %c0_i32_17 : i32
    %27 = arith.extui %26 : i1 to i32
    %c0_i32_18 = arith.constant 0 : i32
    %28 = arith.cmpi ne, %27, %c0_i32_18 : i32
    scf.if %28 {
      %c0_19 = arith.constant 0 : index
      %c0_20 = arith.constant 0 : index
      %29 = vector.load %arg10[%c0_19, %c0_20] : memref<16x128xf32, #tpu.memory_space<vmem>>, vector<16x128xf32>
      %c0_21 = arith.constant 0 : index
      %c0_22 = arith.constant 0 : index
      %30 = vector.load %arg8[%c0_21, %c0_22] : memref<1x128xf32, #tpu.memory_space<vmem>>, vector<1x128xf32>
      %31 = vector.broadcast %30 : vector<1x128xf32> to vector<16x128xf32>
      %32 = arith.addf %29, %31 : vector<16x128xf32>
      %c0_23 = arith.constant 0 : index
      %c0_24 = arith.constant 0 : index
      %33 = vector.load %arg9[%c0_23, %c0_24] : memref<16x128xf32, #tpu.memory_space<vmem>>, vector<16x128xf32>
      tpu.vector_store %arg9[%c0_23, %c0_24], %32 {strides = array<i32>} : memref<16x128xf32, #tpu.memory_space<vmem>>, vector<16x128xf32>,
    } else {
    }
    return
  }
  func.func @transform_0(%arg0: i32, %arg1: i32) -> (i32, i32) {
    %c0_i32 = arith.constant 0 : i32
    %c0_i32_0 = arith.constant 0 : i32
    return %arg0, %c0_i32 : i32, i32
  }
  func.func @transform_1(%arg0: i32, %arg1: i32) -> (i32, i32) {
    %c0_i32 = arith.constant 0 : i32
    %c0_i32_0 = arith.constant 0 : i32
    return %c0_i32, %arg1 : i32, i32
  }
  func.func @transform_2(%arg0: i32, %arg1: i32) -> (i32, i32) {
    %c0_i32 = arith.constant 0 : i32
    %c0_i32_0 = arith.constant 0 : i32
    return %c0_i32, %arg1 : i32, i32
  }
  func.func @transform_3(%arg0: i32, %arg1: i32) -> (i32, i32) {
    %c0_i32 = arith.constant 0 : i32
    %c0_i32_0 = arith.constant 0 : i32
    return %c0_i32, %arg1 : i32, i32
  }
  func.func @transform_4(%arg0: i32, %arg1: i32) -> (i32, i32) {
    %c0_i32 = arith.constant 0 : i32
    %c0_i32_0 = arith.constant 0 : i32
    return %c0_i32, %arg1 : i32, i32
  }
  func.func @transform_5(%arg0: i32, %arg1: i32) -> (i32, i32) {
    %c0_i32 = arith.constant 0 : i32
    %c0_i32_0 = arith.constant 0 : i32
    return %arg1, %c0_i32 : i32, i32
  }
  func.func @transform_6(%arg0: i32, %arg1: i32) -> (i32, i32) {
    %c0_i32 = arith.constant 0 : i32
    %c0_i32_0 = arith.constant 0 : i32
    %c0_i32_1 = arith.constant 0 : i32
    return %c0_i32, %c0_i32_0 : i32, i32
  }
  func.func @transform_7(%arg0: i32, %arg1: i32) -> (i32, i32) {
    %c0_i32 = arith.constant 0 : i32
    %c0_i32_0 = arith.constant 0 : i32
    return %arg0, %c0_i32 : i32, i32
  }
}

</mosaic_0001>

<llo_original>
// kernel: llama_mlp.1
$region0: #{llama_mlp.1}
  #allocation0 [shape = 'u32[]', space=smem, size = 0x4, offset = 0x4, fixed_abs, tag = 'smem constant byte address 0x4 - core index']
  #allocation1 [shape = 'u32[72,128]{1,0:T(1,128)}', space=vmem, size = 0x9000, scoped, tag = 'internal scratch']
  #allocation2 [shape = 'f32[16,128]{1,0:T(8,128)}', space=vmem, size = 0x2000, scoped, tag = 'scratch operand']
  %s0 = inlined_call_operand.hbm [shape: f32[16,128], index: 0, kind: input, shape index: {}]
  %s1 = inlined_call_operand.hbm [shape: f32[128,256], index: 1, kind: input, shape index: {}]
  %s2 = inlined_call_operand.hbm [shape: f32[1,256], index: 2, kind: input, shape index: {}]
  %s3 = inlined_call_operand.hbm [shape: f32[128,256], index: 3, kind: input, shape index: {}]
  %s4 = inlined_call_operand.vmem [shape: f32[1,256], index: 4, kind: input, shape index: {}]
  %s5 = inlined_call_operand.hbm [shape: f32[256,128], index: 5, kind: input, shape index: {}]
  %s6 = inlined_call_operand.vmem [shape: f32[1,128], index: 6, kind: input, shape index: {}]
  %s7 = inlined_call_operand.hbm [shape: f32[16,128], index: 7, kind: output, shape index: {}]
  %s8 = sld [smem:[#allocation0]]
  $region70: #{llama_mlp.1} parent=0
    _
  %s10 = ssub.s32 1, %s8
  %s11 = scalar_select 0, %s10, %s8
  $region1: #{llama_mlp.1} parent=0
    #allocation3 [shape = 'u8[8192]{0}', space=vmem, size = 0x2000, scoped, tag = 'input window, operand 0, single buffered']
    #allocation4 [shape = 's32[1]{0}', space=sflag, size = 0x4, scoped, tag = 'scoped memory for llama_mlp.1']
    #allocation5 [shape = 's32[1]{0}', space=sflag, size = 0x4, scoped, tag = 'scoped memory for llama_mlp.1']
    #allocation6 [shape = 'u8[131072]{0}', space=vmem, size = 0x20000, scoped, tag = 'input window, operand 1, single buffered']
    #allocation7 [shape = 's32[1]{0}', space=sflag, size = 0x4, scoped, tag = 'scoped memory for llama_mlp.1']
    #allocation8 [shape = 'u8[1024]{0}', space=vmem, size = 0x400, scoped, tag = 'input window, operand 2, single buffered']
    #allocation9 [shape = 'u8[131072]{0}', space=vmem, size = 0x20000, scoped, tag = 'input window, operand 3, single buffered']
    #allocation10 [shape = 's32[1]{0}', space=sflag, size = 0x4, scoped, tag = 'scoped memory for llama_mlp.1']
    #allocation11 [shape = 'u8[131072]{0}', space=vmem, size = 0x20000, scoped, tag = 'input window, operand 5, single buffered']
    #allocation12 [shape = 'u8[8192]{0}', space=vmem, size = 0x2000, scoped, tag = 'output window, operand 0, single buffered']
    %12 = vsyncpa [#allocation4], 0
    %13 = vsyncpa [#allocation7], 0
    %14 = vsyncpa [#allocation10], 0
    %15 = vsyncpa [#allocation5], 0
    // Predicated region
    $region2: #{llama_mlp.1} parent=1 // pred_check
      _
    $region3: #{llama_mlp.1} parent=1 // pred_check_branch
      %17 = sbr.rel (0) target = $region5
    $region4: #{llama_mlp.1} parent=1 // pred_region
      %19 = vsyncadd [#allocation4], 0
      %s20 = sshll.u32 %s0, 4
      %s21 = int_to_ptr.hbm [resolvable:$true] %s20
      %s22 = sshll.u32 [#allocation3], 4
      %s23 = int_to_ptr.vmem [resolvable:$true] %s22
      %28 = dma.hbm_to_vmem [thread:$0]  %s21, 256, %s23, [#allocation4], 128, 128, 8
    $region5: #{llama_mlp.1} parent=1 // pred_fallthru
      _
    // Predicated region
    $region6: #{llama_mlp.1} parent=1 // pred_check
      _
    $region7: #{llama_mlp.1} parent=1 // pred_check_branch
      %30 = sbr.rel (0) target = $region9
    $region8: #{llama_mlp.1} parent=1 // pred_region
      %32 = vsyncadd [#allocation7], 0
      %s33 = sshll.u32 %s1, 4
      %s34 = int_to_ptr.hbm [resolvable:$true] %s33
      %s35 = sshll.u32 [#allocation6], 4
      %s36 = int_to_ptr.vmem [resolvable:$true] %s35
      %41 = dma.hbm_to_vmem [thread:$0]  %s34, 4096, %s36, [#allocation7], 256, 256, 16
    $region9: #{llama_mlp.1} parent=1 // pred_fallthru
      _
    // Predicated region
    $region10: #{llama_mlp.1} parent=1 // pred_check
      _
    $region11: #{llama_mlp.1} parent=1 // pred_check_branch
      %43 = sbr.rel (0) target = $region13
    $region12: #{llama_mlp.1} parent=1 // pred_region
      %45 = vsyncadd [#allocation7], 0
      %s47 = sshll.u32 %s2, 4
      %s48 = int_to_ptr.hbm [resolvable:$true] %s47
      %s49 = sshll.u32 [#allocation8], 4
      %s50 = int_to_ptr.vmem [resolvable:$true] %s49
      %52 = dma.hbm_to_vmem [thread:$0]  %s48, 32, %s50, [#allocation7]
    $region13: #{llama_mlp.1} parent=1 // pred_fallthru
      _
    // Predicated region
    $region14: #{llama_mlp.1} parent=1 // pred_check
      _
    $region15: #{llama_mlp.1} parent=1 // pred_check_branch
      %54 = sbr.rel (0) target = $region17
    $region16: #{llama_mlp.1} parent=1 // pred_region
      %56 = vsyncadd [#allocation10], 0
      %s57 = sshll.u32 %s3, 4
      %s58 = int_to_ptr.hbm [resolvable:$true] %s57
      %s59 = sshll.u32 [#allocation9], 4
      %s60 = int_to_ptr.vmem [resolvable:$true] %s59
      %65 = dma.hbm_to_vmem [thread:$0]  %s58, 4096, %s60, [#allocation10], 256, 256, 16
    $region17: #{llama_mlp.1} parent=1 // pred_fallthru
      _
    // Predicated region
    $region18: #{llama_mlp.1} parent=1 // pred_check
      _
    $region19: #{llama_mlp.1} parent=1 // pred_check_branch
      %67 = sbr.rel (0) target = $region21
    $region20: #{llama_mlp.1} parent=1 // pred_region
      _
    $region21: #{llama_mlp.1} parent=1 // pred_fallthru
      _
    // Predicated region
    $region22: #{llama_mlp.1} parent=1 // pred_check
      _
    $region23: #{llama_mlp.1} parent=1 // pred_check_branch
      %69 = sbr.rel (0) target = $region25
    $region24: #{llama_mlp.1} parent=1 // pred_region
      %71 = vsyncadd [#allocation10], 0
      %s72 = sshll.u32 %s5, 4
      %s73 = int_to_ptr.hbm [resolvable:$true] %s72
      %s74 = sshll.u32 [#allocation11], 4
      %s75 = int_to_ptr.vmem [resolvable:$true] %s74
      %80 = dma.hbm_to_vmem [thread:$0]  %s73, 4096, %s75, [#allocation10], 128, 128, 8
    $region25: #{llama_mlp.1} parent=1 // pred_fallthru
      _
    // Predicated region
    $region26: #{llama_mlp.1} parent=1 // pred_check
      _
    $region27: #{llama_mlp.1} parent=1 // pred_check_branch
      %82 = sbr.rel (0) target = $region29
    $region28: #{llama_mlp.1} parent=1 // pred_region
      _
    $region29: #{llama_mlp.1} parent=1 // pred_fallthru
      _
    // Predicated region
    $region30: #{llama_mlp.1} parent=1 // pred_check
      _
    $region31: #{llama_mlp.1} parent=1 // pred_check_branch
      %84 = sbr.rel (0) target = $region33
    $region32: #{llama_mlp.1} parent=1 // pred_region
      %86 = dma.done [#allocation4], 256
    $region33: #{llama_mlp.1} parent=1 // pred_fallthru
      _
    // Predicated region
    $region34: #{llama_mlp.1} parent=1 // pred_check
      _
    $region35: #{llama_mlp.1} parent=1 // pred_check_branch
      %88 = sbr.rel (0) target = $region37
    $region36: #{llama_mlp.1} parent=1 // pred_region
      %90 = dma.done [#allocation7], 4096
    $region37: #{llama_mlp.1} parent=1 // pred_fallthru
      _
    // Predicated region
    $region38: #{llama_mlp.1} parent=1 // pred_check
      _
    $region39: #{llama_mlp.1} parent=1 // pred_check_branch
      %92 = sbr.rel (0) target = $region41
    $region40: #{llama_mlp.1} parent=1 // pred_region
      %94 = dma.done [#allocation7], 32
    $region41: #{llama_mlp.1} parent=1 // pred_fallthru
      _
    // Predicated region
    $region42: #{llama_mlp.1} parent=1 // pred_check
      _
    $region43: #{llama_mlp.1} parent=1 // pred_check_branch
      %96 = sbr.rel (0) target = $region45
    $region44: #{llama_mlp.1} parent=1 // pred_region
      %98 = dma.done [#allocation10], 4096
    $region45: #{llama_mlp.1} parent=1 // pred_fallthru
      _
    // Predicated region
    $region46: #{llama_mlp.1} parent=1 // pred_check
      _
    $region47: #{llama_mlp.1} parent=1 // pred_check_branch
      %100 = sbr.rel (0) target = $region49
    $region48: #{llama_mlp.1} parent=1 // pred_region
      %102 = dma.done [#allocation10], 4096
    $region49: #{llama_mlp.1} parent=1 // pred_fallthru
      _
    %v103 = vld [vmem:[#allocation3] sm:$0xff]
    %v104 = vld [vmem:[#allocation3 + $0x8] sm:$0xff]
    %v105 = vld [vmem:[#allocation6] sm:$0xff]
    %v106 = vld [vmem:[#allocation6 + $0x8] sm:$0xff]
    %v107 = vld [vmem:[#allocation6 + $0x10] sm:$0xff]
    %v108 = vld [vmem:[#allocation6 + $0x18] sm:$0xff]
    %v109 = vld [vmem:[#allocation6 + $0x20] sm:$0xff]
    %v110 = vld [vmem:[#allocation6 + $0x28] sm:$0xff]
    %v111 = vld [vmem:[#allocation6 + $0x30] sm:$0xff]
    %v112 = vld [vmem:[#allocation6 + $0x38] sm:$0xff]
    %v113 = vld [vmem:[#allocation6 + $0x40] sm:$0xff]
    %v114 = vld [vmem:[#allocation6 + $0x48] sm:$0xff]
    %v115 = vld [vmem:[#allocation6 + $0x50] sm:$0xff]
    %v116 = vld [vmem:[#allocation6 + $0x58] sm:$0xff]
    %v117 = vld [vmem:[#allocation6 + $0x60] sm:$0xff]
    %v118 = vld [vmem:[#allocation6 + $0x68] sm:$0xff]
    %v119 = vld [vmem:[#allocation6 + $0x70] sm:$0xff]
    %v120 = vld [vmem:[#allocation6 + $0x78] sm:$0xff]
    %v121 = vld [vmem:[#allocation6 + $0x80] sm:$0xff]
    %v122 = vld [vmem:[#allocation6 + $0x88] sm:$0xff]
    %v123 = vld [vmem:[#allocation6 + $0x90] sm:$0xff]
    %v124 = vld [vmem:[#allocation6 + $0x98] sm:$0xff]
    %v125 = vld [vmem:[#allocation6 + $0xa0] sm:$0xff]
    %v126 = vld [vmem:[#allocation6 + $0xa8] sm:$0xff]
    %v127 = vld [vmem:[#allocation6 + $0xb0] sm:$0xff]
    %v128 = vld [vmem:[#allocation6 + $0xb8] sm:$0xff]
    %v129 = vld [vmem:[#allocation6 + $0xc0] sm:$0xff]
    %v130 = vld [vmem:[#allocation6 + $0xc8] sm:$0xff]
    %v131 = vld [vmem:[#allocation6 + $0xd0] sm:$0xff]
    %v132 = vld [vmem:[#allocation6 + $0xd8] sm:$0xff]
    %v133 = vld [vmem:[#allocation6 + $0xe0] sm:$0xff]
    %v134 = vld [vmem:[#allocation6 + $0xe8] sm:$0xff]
    %v135 = vld [vmem:[#allocation6 + $0xf0] sm:$0xff]
    %v136 = vld [vmem:[#allocation6 + $0xf8] sm:$0xff]
    %v137 = vld [vmem:[#allocation8] sm:$0x3]
    %v139 = vperm.slane %v137, 0
    %v140 = vperm.slane %v137, 1
    %143 = vmatpush.msra.mxu0 %v135
    %144 = vmatpush.msra.mxu0 %v133
    %145 = vmatpush.msra.mxu0 %v131
    %146 = vmatpush.msra.mxu0 %v129
    %147 = vmatpush.msra.mxu0 %v127
    %148 = vmatpush.msra.mxu0 %v125
    %149 = vmatpush.msra.mxu0 %v123
    %150 = vmatpush.msra.mxu0 %v121
    %151 = vmatpush.msra.mxu0 %v119
    %152 = vmatpush.msra.mxu0 %v117
    %153 = vmatpush.msra.mxu0 %v115
    %154 = vmatpush.msra.mxu0 %v113
    %155 = vmatpush.msra.mxu0 %v111
    %156 = vmatpush.msra.mxu0 %v109
    %157 = vmatpush.msra.mxu0 %v107
    %158 = vmatpush.msra.mxu0 %v105
    %159 = vmatmul.f32.gmra.mxu0 %v103
    %v160 = vpop.f32.mrf.mxu0
    %v161 = vadd.f32 %v139, %v160
    %162 = vmatmul.f32.gmra.mxu0 %v104
    %v163 = vpop.f32.mrf.mxu0
    %v164 = vadd.f32 %v139, %v163
    %165 = vdwg.mxu0
    %166 = vmatpush.msra.mxu0 %v136
    %167 = vmatpush.msra.mxu0 %v134
    %168 = vmatpush.msra.mxu0 %v132
    %169 = vmatpush.msra.mxu0 %v130
    %170 = vmatpush.msra.mxu0 %v128
    %171 = vmatpush.msra.mxu0 %v126
    %172 = vmatpush.msra.mxu0 %v124
    %173 = vmatpush.msra.mxu0 %v122
    %174 = vmatpush.msra.mxu0 %v120
    %175 = vmatpush.msra.mxu0 %v118
    %176 = vmatpush.msra.mxu0 %v116
    %177 = vmatpush.msra.mxu0 %v114
    %178 = vmatpush.msra.mxu0 %v112
    %179 = vmatpush.msra.mxu0 %v110
    %180 = vmatpush.msra.mxu0 %v108
    %181 = vmatpush.msra.mxu0 %v106
    %182 = vmatmul.f32.gmra.mxu0 %v103
    %v183 = vpop.f32.mrf.mxu0
    %v184 = vadd.f32 %v140, %v183
    %185 = vmatmul.f32.gmra.mxu0 %v104
    %v186 = vpop.f32.mrf.mxu0
    %v187 = vadd.f32 %v140, %v186
    %188 = vdwg.mxu0
    %v189 = vld [vmem:[#allocation9] sm:$0xff]
    %v190 = vld [vmem:[#allocation9 + $0x8] sm:$0xff]
    %v191 = vld [vmem:[#allocation9 + $0x10] sm:$0xff]
    %v192 = vld [vmem:[#allocation9 + $0x18] sm:$0xff]
    %v193 = vld [vmem:[#allocation9 + $0x20] sm:$0xff]
    %v194 = vld [vmem:[#allocation9 + $0x28] sm:$0xff]
    %v195 = vld [vmem:[#allocation9 + $0x30] sm:$0xff]
    %v196 = vld [vmem:[#allocation9 + $0x38] sm:$0xff]
    %v197 = vld [vmem:[#allocation9 + $0x40] sm:$0xff]
    %v198 = vld [vmem:[#allocation9 + $0x48] sm:$0xff]
    %v199 = vld [vmem:[#allocation9 + $0x50] sm:$0xff]
    %v200 = vld [vmem:[#allocation9 + $0x58] sm:$0xff]
    %v201 = vld [vmem:[#allocation9 + $0x60] sm:$0xff]
    %v202 = vld [vmem:[#allocation9 + $0x68] sm:$0xff]
    %v203 = vld [vmem:[#allocation9 + $0x70] sm:$0xff]
    %v204 = vld [vmem:[#allocation9 + $0x78] sm:$0xff]
    %v205 = vld [vmem:[#allocation9 + $0x80] sm:$0xff]
    %v206 = vld [vmem:[#allocation9 + $0x88] sm:$0xff]
    %v207 = vld [vmem:[#allocation9 + $0x90] sm:$0xff]
    %v208 = vld [vmem:[#allocation9 + $0x98] sm:$0xff]
    %v209 = vld [vmem:[#allocation9 + $0xa0] sm:$0xff]
    %v210 = vld [vmem:[#allocation9 + $0xa8] sm:$0xff]
    %v211 = vld [vmem:[#allocation9 + $0xb0] sm:$0xff]
    %v212 = vld [vmem:[#allocation9 + $0xb8] sm:$0xff]
    %v213 = vld [vmem:[#allocation9 + $0xc0] sm:$0xff]
    %v214 = vld [vmem:[#allocation9 + $0xc8] sm:$0xff]
    %v215 = vld [vmem:[#allocation9 + $0xd0] sm:$0xff]
    %v216 = vld [vmem:[#allocation9 + $0xd8] sm:$0xff]
    %v217 = vld [vmem:[#allocation9 + $0xe0] sm:$0xff]
    %v218 = vld [vmem:[#allocation9 + $0xe8] sm:$0xff]
    %v219 = vld [vmem:[#allocation9 + $0xf0] sm:$0xff]
    %v220 = vld [vmem:[#allocation9 + $0xf8] sm:$0xff]
    %v221 = vld [vmem:[%s4] sm:$0x3]
    %v223 = vperm.slane %v221, 0
    %v224 = vperm.slane %v221, 1
    %227 = vmatpush.msra.mxu0 %v219
    %228 = vmatpush.msra.mxu0 %v217
    %229 = vmatpush.msra.mxu0 %v215
    %230 = vmatpush.msra.mxu0 %v213
    %231 = vmatpush.msra.mxu0 %v211
    %232 = vmatpush.msra.mxu0 %v209
    %233 = vmatpush.msra.mxu0 %v207
    %234 = vmatpush.msra.mxu0 %v205
    %235 = vmatpush.msra.mxu0 %v203
    %236 = vmatpush.msra.mxu0 %v201
    %237 = vmatpush.msra.mxu0 %v199
    %238 = vmatpush.msra.mxu0 %v197
    %239 = vmatpush.msra.mxu0 %v195
    %240 = vmatpush.msra.mxu0 %v193
    %241 = vmatpush.msra.mxu0 %v191
    %242 = vmatpush.msra.mxu0 %v189
    %243 = vmatmul.f32.gmra.mxu0 %v103
    %v244 = vpop.f32.mrf.mxu0
    %v245 = vadd.f32 %v223, %v244
    %246 = vmatmul.f32.gmra.mxu0 %v104
    %v247 = vpop.f32.mrf.mxu0
    %v248 = vadd.f32 %v223, %v247
    %249 = vdwg.mxu0
    %250 = vmatpush.msra.mxu0 %v220
    %251 = vmatpush.msra.mxu0 %v218
    %252 = vmatpush.msra.mxu0 %v216
    %253 = vmatpush.msra.mxu0 %v214
    %254 = vmatpush.msra.mxu0 %v212
    %255 = vmatpush.msra.mxu0 %v210
    %256 = vmatpush.msra.mxu0 %v208
    %257 = vmatpush.msra.mxu0 %v206
    %258 = vmatpush.msra.mxu0 %v204
    %259 = vmatpush.msra.mxu0 %v202
    %260 = vmatpush.msra.mxu0 %v200
    %261 = vmatpush.msra.mxu0 %v198
    %262 = vmatpush.msra.mxu0 %v196
    %263 = vmatpush.msra.mxu0 %v194
    %264 = vmatpush.msra.mxu0 %v192
    %265 = vmatpush.msra.mxu0 %v190
    %266 = vmatmul.f32.gmra.mxu0 %v103
    %v267 = vpop.f32.mrf.mxu0
    %v268 = vadd.f32 %v224, %v267
    %269 = vmatmul.f32.gmra.mxu0 %v104
    %v270 = vpop.f32.mrf.mxu0
    %v271 = vadd.f32 %v224, %v270
    %272 = vdwg.mxu0
    %v273 = vxor.u32 %v161, 2147483648
    %v274 = vxor.u32 %v184, 2147483648
    %v275 = vxor.u32 %v164, 2147483648
    %v276 = vxor.u32 %v187, 2147483648
    %v277 = vmul.f32 %v273, 1.442695
    %v278 = vpow.pop %v277
    %v279 = vmul.f32 %v274, 1.442695
    %v280 = vpow.pop %v279
    %v281 = vmul.f32 %v275, 1.442695
    %v282 = vpow.pop %v281
    %v283 = vmul.f32 %v276, 1.442695
    %v284 = vpow.pop %v283
    %v285 = vadd.f32 %v278, 1.0
    %v286 = vadd.f32 %v280, 1.0
    %v287 = vadd.f32 %v282, 1.0
    %v288 = vadd.f32 %v284, 1.0
    %v289 = vrcp.pop %v285
    %v290 = vmul.f32 %v285, %v289
    %v291 = vsub.f32 1.0, %v290
    %v292 = vmul.f32 %v289, %v291
    %v293 = vadd.f32 %v289, %v292
    %vm294 = vweird.f32 %v285
    %vm295 = vweird.f32 %v289
    %vm296 = vmor %vm294, %vm295
    %v297 = vsel %vm296, %v289, %v293
    %v298 = vand.u32 2147483647, %v285
    %vm299 = vcmp.eq.f32.partialorder %v298, 8.507059e+37
    %v300 = vand.u32 %v285, 2147483648
    %v301 = vor.u32 1.1754944e-38, %v300
    %v302 = vsel %vm299, %v301, %v297
    %v303 = vmul.f32 1.0, %v302
    %v304 = vrcp.pop %v286
    %v305 = vmul.f32 %v286, %v304
    %v306 = vsub.f32 1.0, %v305
    %v307 = vmul.f32 %v304, %v306
    %v308 = vadd.f32 %v304, %v307
    %vm309 = vweird.f32 %v286
    %vm310 = vweird.f32 %v304
    %vm311 = vmor %vm309, %vm310
    %v312 = vsel %vm311, %v304, %v308
    %v313 = vand.u32 2147483647, %v286
    %vm314 = vcmp.eq.f32.partialorder %v313, 8.507059e+37
    %v315 = vand.u32 %v286, 2147483648
    %v316 = vor.u32 1.1754944e-38, %v315
    %v317 = vsel %vm314, %v316, %v312
    %v318 = vmul.f32 1.0, %v317
    %v319 = vrcp.pop %v287
    %v320 = vmul.f32 %v287, %v319
    %v321 = vsub.f32 1.0, %v320
    %v322 = vmul.f32 %v319, %v321
    %v323 = vadd.f32 %v319, %v322
    %vm324 = vweird.f32 %v287
    %vm325 = vweird.f32 %v319
    %vm326 = vmor %vm324, %vm325
    %v327 = vsel %vm326, %v319, %v323
    %v328 = vand.u32 2147483647, %v287
    %vm329 = vcmp.eq.f32.partialorder %v328, 8.507059e+37
    %v330 = vand.u32 %v287, 2147483648
    %v331 = vor.u32 1.1754944e-38, %v330
    %v332 = vsel %vm329, %v331, %v327
    %v333 = vmul.f32 1.0, %v332
    %v334 = vrcp.pop %v288
    %v335 = vmul.f32 %v288, %v334
    %v336 = vsub.f32 1.0, %v335
    %v337 = vmul.f32 %v334, %v336
    %v338 = vadd.f32 %v334, %v337
    %vm339 = vweird.f32 %v288
    %vm340 = vweird.f32 %v334
    %vm341 = vmor %vm339, %vm340
    %v342 = vsel %vm341, %v334, %v338
    %v343 = vand.u32 2147483647, %v288
    %vm344 = vcmp.eq.f32.partialorder %v343, 8.507059e+37
    %v345 = vand.u32 %v288, 2147483648
    %v346 = vor.u32 1.1754944e-38, %v345
    %v347 = vsel %vm344, %v346, %v342
    %v348 = vmul.f32 1.0, %v347
    %v349 = vmul.f32 %v161, %v303
    %v350 = vmul.f32 %v184, %v318
    %v351 = vmul.f32 %v164, %v333
    %v352 = vmul.f32 %v187, %v348
    %v353 = vmul.f32 %v245, %v349
    %v354 = vmul.f32 %v268, %v350
    %v355 = vmul.f32 %v248, %v351
    %v356 = vmul.f32 %v271, %v352
    %v357 = vld [vmem:[#allocation11] sm:$0xff]
    %v358 = vld [vmem:[#allocation11 + $0x8] sm:$0xff]
    %v359 = vld [vmem:[#allocation11 + $0x10] sm:$0xff]
    %v360 = vld [vmem:[#allocation11 + $0x18] sm:$0xff]
    %v361 = vld [vmem:[#allocation11 + $0x20] sm:$0xff]
    %v362 = vld [vmem:[#allocation11 + $0x28] sm:$0xff]
    %v363 = vld [vmem:[#allocation11 + $0x30] sm:$0xff]
    %v364 = vld [vmem:[#allocation11 + $0x38] sm:$0xff]
    %v365 = vld [vmem:[#allocation11 + $0x40] sm:$0xff]
    %v366 = vld [vmem:[#allocation11 + $0x48] sm:$0xff]
    %v367 = vld [vmem:[#allocation11 + $0x50] sm:$0xff]
    %v368 = vld [vmem:[#allocation11 + $0x58] sm:$0xff]
    %v369 = vld [vmem:[#allocation11 + $0x60] sm:$0xff]
    %v370 = vld [vmem:[#allocation11 + $0x68] sm:$0xff]
    %v371 = vld [vmem:[#allocation11 + $0x70] sm:$0xff]
    %v372 = vld [vmem:[#allocation11 + $0x78] sm:$0xff]
    %v373 = vld [vmem:[#allocation11 + $0x80] sm:$0xff]
    %v374 = vld [vmem:[#allocation11 + $0x88] sm:$0xff]
    %v375 = vld [vmem:[#allocation11 + $0x90] sm:$0xff]
    %v376 = vld [vmem:[#allocation11 + $0x98] sm:$0xff]
    %v377 = vld [vmem:[#allocation11 + $0xa0] sm:$0xff]
    %v378 = vld [vmem:[#allocation11 + $0xa8] sm:$0xff]
    %v379 = vld [vmem:[#allocation11 + $0xb0] sm:$0xff]
    %v380 = vld [vmem:[#allocation11 + $0xb8] sm:$0xff]
    %v381 = vld [vmem:[#allocation11 + $0xc0] sm:$0xff]
    %v382 = vld [vmem:[#allocation11 + $0xc8] sm:$0xff]
    %v383 = vld [vmem:[#allocation11 + $0xd0] sm:$0xff]
    %v384 = vld [vmem:[#allocation11 + $0xd8] sm:$0xff]
    %v385 = vld [vmem:[#allocation11 + $0xe0] sm:$0xff]
    %v386 = vld [vmem:[#allocation11 + $0xe8] sm:$0xff]
    %v387 = vld [vmem:[#allocation11 + $0xf0] sm:$0xff]
    %v388 = vld [vmem:[#allocation11 + $0xf8] sm:$0xff]
    %389 = vmatpush.msra.mxu0 %v372
    %390 = vmatpush.msra.mxu0 %v371
    %391 = vmatpush.msra.mxu0 %v370
    %392 = vmatpush.msra.mxu0 %v369
    %393 = vmatpush.msra.mxu0 %v368
    %394 = vmatpush.msra.mxu0 %v367
    %395 = vmatpush.msra.mxu0 %v366
    %396 = vmatpush.msra.mxu0 %v365
    %397 = vmatpush.msra.mxu0 %v364
    %398 = vmatpush.msra.mxu0 %v363
    %399 = vmatpush.msra.mxu0 %v362
    %400 = vmatpush.msra.mxu0 %v361
    %401 = vmatpush.msra.mxu0 %v360
    %402 = vmatpush.msra.mxu0 %v359
    %403 = vmatpush.msra.mxu0 %v358
    %404 = vmatpush.msra.mxu0 %v357
    %405 = vmatmul.f32.gmra.mxu0 %v353
    %v406 = vpop.f32.mrf.mxu0
    %v407 = vadd.f32 0.0, %v406
    %408 = vmatmul.f32.gmra.mxu0 %v355
    %v409 = vpop.f32.mrf.mxu0
    %v410 = vadd.f32 0.0, %v409
    %411 = vdwg.mxu0
    %412 = vmatpush.msra.mxu0 %v388
    %413 = vmatpush.msra.mxu0 %v387
    %414 = vmatpush.msra.mxu0 %v386
    %415 = vmatpush.msra.mxu0 %v385
    %416 = vmatpush.msra.mxu0 %v384
    %417 = vmatpush.msra.mxu0 %v383
    %418 = vmatpush.msra.mxu0 %v382
    %419 = vmatpush.msra.mxu0 %v381
    %420 = vmatpush.msra.mxu0 %v380
    %421 = vmatpush.msra.mxu0 %v379
    %422 = vmatpush.msra.mxu0 %v378
    %423 = vmatpush.msra.mxu0 %v377
    %424 = vmatpush.msra.mxu0 %v376
    %425 = vmatpush.msra.mxu0 %v375
    %426 = vmatpush.msra.mxu0 %v374
    %427 = vmatpush.msra.mxu0 %v373
    %428 = vmatmul.f32.gmra.mxu0 %v354
    %v429 = vpop.f32.mrf.mxu0
    %v430 = vadd.f32 %v407, %v429
    %431 = vmatmul.f32.gmra.mxu0 %v356
    %v432 = vpop.f32.mrf.mxu0
    %v433 = vadd.f32 %v410, %v432
    %434 = vdwg.mxu0
    %p435 = scmp.eq.s32.totalorder 0, 0
    // Predicated region
    $region50: #{llama_mlp.1} parent=1 // pred_check
      %p436 = pneg %p435
    $region51: #{llama_mlp.1} parent=1 // pred_check_branch
      %438 = sbr.rel (%p436) target = $region53
    $region52: #{llama_mlp.1} parent=1 // pred_region
      %439 = vst [vmem:[#allocation2] sm:$0xff] %v430
      %440 = vst [vmem:[#allocation2 + $0x8] sm:$0xff] %v433
    $region53: #{llama_mlp.1} parent=1 // pred_fallthru
      _
    %p441 = scmp.gt.s32.totalorder 0, 0
    // Predicated region
    $region54: #{llama_mlp.1} parent=1 // pred_check
      %p442 = pneg %p441
    $region55: #{llama_mlp.1} parent=1 // pred_check_branch
      %444 = sbr.rel (%p442) target = $region57
    $region56: #{llama_mlp.1} parent=1 // pred_region
      %v445 = vld [vmem:[#allocation2] sm:$0xff]
      %v446 = vld [vmem:[#allocation2 + $0x8] sm:$0xff]
      %v447 = vadd.f32 %v445, %v430
      %v448 = vadd.f32 %v446, %v433
      %449 = vst [vmem:[#allocation2] sm:$0xff] %v447
      %450 = vst [vmem:[#allocation2 + $0x8] sm:$0xff] %v448
    $region57: #{llama_mlp.1} parent=1 // pred_fallthru
      _
    // Predicated region
    $region58: #{llama_mlp.1} parent=1 // pred_check
      %p451 = pneg %p435
    $region59: #{llama_mlp.1} parent=1 // pred_check_branch
      %453 = sbr.rel (%p451) target = $region61
    $region60: #{llama_mlp.1} parent=1 // pred_region
      %v454 = vld [vmem:[#allocation2] sm:$0xff]
      %v455 = vld [vmem:[#allocation2 + $0x8] sm:$0xff]
      %v456 = vld [vmem:[%s6] sm:$0x1]
      %v458 = vperm.slane %v456, 0
      %v460 = vadd.f32 %v454, %v458
      %v461 = vadd.f32 %v455, %v458
      %462 = vst [vmem:[#allocation12] sm:$0xff] %v460
      %463 = vst [vmem:[#allocation12 + $0x8] sm:$0xff] %v461
    $region61: #{llama_mlp.1} parent=1 // pred_fallthru
      _
    // Predicated region
    $region62: #{llama_mlp.1} parent=1 // pred_check
      _
    $region63: #{llama_mlp.1} parent=1 // pred_check_branch
      %465 = sbr.rel (0) target = $region65
    $region64: #{llama_mlp.1} parent=1 // pred_region
      %467 = vsyncadd [#allocation5], 0
      %s468 = sshll.u32 [#allocation12], 4
      %s469 = int_to_ptr.vmem [resolvable:$true] %s468
      %s470 = sshll.u32 %s7, 4
      %s471 = int_to_ptr.hbm [resolvable:$true] %s470
      %476 = dma.vmem_to_hbm [thread:$0]  %s469, 256, %s471, [#allocation5], 128, 128, 8
    $region65: #{llama_mlp.1} parent=1 // pred_fallthru
      _
    // Predicated region
    $region66: #{llama_mlp.1} parent=1 // pred_check
      _
    $region67: #{llama_mlp.1} parent=1 // pred_check_branch
      %478 = sbr.rel (0) target = $region69
    $region68: #{llama_mlp.1} parent=1 // pred_region
      %480 = dma.done [#allocation5], 256
    $region69: #{llama_mlp.1} parent=1 // pred_fallthru
      _
    %481 = vsyncpa [#allocation4], 1
    %482 = vsyncpa [#allocation7], 1
    %483 = vsyncpa [#allocation10], 1
    %484 = vsyncpa [#allocation5], 1

</llo_original>
